<compile_context>
chip_gen: v6e
topology: v6e:2x2x1
jax: 0.10.0
libtpu: 0.0.40
codegen_flags: <defaults>
</compile_context>

<pallas_src>
import math

import jax
import jax.numpy as jnp
from jax.experimental import pallas as pl
from jax.experimental.pallas import tpu as pltpu


def _round_up(x, m):
    return ((x + m - 1) // m) * m


# --------------------------------------------------------------------------
# Kernel: one MXU matmul + f32 bias add.  All operands arrive pre-laid-out:
#   x_ref : (tm, input_dim)        compute dtype (f32 or bf16)
#   w_ref : (input_dim, e_pad)     compute dtype, fused V->O weight, lane-padded
#   b_ref : (1, e_pad)             f32 fused bias
#   o_ref : (tm, e_pad)            out dtype, lane-dense stores
# --------------------------------------------------------------------------
def mha_seq1_fused_kernel(x_ref, w_ref, b_ref, o_ref):
    acc = jnp.dot(x_ref[...], w_ref[...], preferred_element_type=jnp.float32)
    o_ref[...] = (acc + b_ref[...]).astype(o_ref.dtype)


# --------------------------------------------------------------------------
# One-time parameter plumbing (do this at param load, NOT per forward call).
# qkv_proj output is reshaped (B,1,H,3*hd): head h owns output rows
# [h*3*hd, (h+1)*3*hd) of w_qkv, split q|k|v (the custom module's interleaved
# per-head layout, NOT torch.nn.MultiheadAttention's).  With seq==1 only the
# V rows matter; Q/K projections and the softmax are exactly dead work.
# --------------------------------------------------------------------------
def prepare_fused_params(w_qkv, b_qkv, w_o, b_o, num_heads,
                         compute_dtype=jnp.float32):
    embed_dim = w_o.shape[0]
    input_dim = w_qkv.shape[1]
    head_dim = embed_dim // num_heads

    w_qkv_r = w_qkv.reshape(num_heads, 3 * head_dim, input_dim)
    w_v = w_qkv_r[:, 2 * head_dim:, :].reshape(embed_dim, input_dim)   # (E, D)
    b_v = b_qkv.reshape(num_heads, 3 * head_dim)[:, 2 * head_dim:].reshape(embed_dim)

    hi = jax.lax.Precision.HIGHEST
    w_f = jnp.dot(w_v.T.astype(jnp.float32), w_o.T.astype(jnp.float32),
                  precision=hi)                                        # (D, E)
    b_f = jnp.dot(b_v.astype(jnp.float32), w_o.T.astype(jnp.float32),
                  precision=hi) + b_o.astype(jnp.float32)              # (E,)

    # Pad the output feature dim to a multiple of 128 lanes -> unmasked
    # full-lane vector stores in the kernel.
    e_pad = _round_up(embed_dim, 128)
    w_f_p = jnp.zeros((input_dim, e_pad), compute_dtype).at[:, :embed_dim].set(
        w_f.astype(compute_dtype))
    b_f_p = jnp.zeros((1, e_pad), jnp.float32).at[0, :embed_dim].set(b_f)
    return w_f_p, b_f_p, embed_dim


# --------------------------------------------------------------------------
# Forward with pre-fused params.
# --------------------------------------------------------------------------
def mha_forward_fused(x, w_f_p, b_f_p, embed_dim, *, out_dtype=None,
                      tm_cap=512, force_pallas=None):
    batch, input_dim = x.shape
    assert w_f_p.shape[0] == input_dim
    e_pad = w_f_p.shape[1]
    compute_dtype = w_f_p.dtype
    out_dtype = x.dtype if out_dtype is None else out_dtype

    use_pallas = force_pallas if force_pallas is not None else batch >= 64
    if not use_pallas:
        # Tiny batches: pallas_call launch + per-step overhead dwarfs the
        # nanoseconds of compute; let XLA's fused GEMM handle it.
        out = jnp.dot(x.astype(compute_dtype), w_f_p,
                      preferred_element_type=jnp.float32) + b_f_p
        return out[:, :embed_dim].astype(out_dtype)

    # Batch tile: large tiles for a memory-bound stream, but keep >= 2 grid
    # steps when the batch allows so both v7x TensorCores get a share of the
    # "parallel" axis.  Batch is zero-padded to a multiple of tm so blocks
    # stay (8,128)-aligned; padded rows are sliced off at the end.
    tm = min(tm_cap, _round_up(max(pl.cdiv(batch, 2), 1), 8))
    b_pad = _round_up(batch, tm)
    x_p = jnp.zeros((b_pad, input_dim), compute_dtype).at[:batch, :].set(
        x.astype(compute_dtype))

    out = pl.pallas_call(
        mha_seq1_fused_kernel,
        out_shape=jax.ShapeDtypeStruct((b_pad, e_pad), out_dtype),
        grid_spec=pltpu.PrefetchScalarGridSpec(
            num_scalar_prefetch=0,
            grid=(b_pad // tm,),
            in_specs=[
                # activations stream over the batch grid
                pl.BlockSpec((tm, input_dim), lambda i: (i, 0)),
                # fused weight / bias: constant index_map -> resident in VMEM
                pl.BlockSpec((input_dim, e_pad), lambda i: (0, 0)),
                pl.BlockSpec((1, e_pad), lambda i: (0, 0)),
            ],
            out_specs=pl.BlockSpec((tm, e_pad), lambda i: (i, 0)),
        ),
        compiler_params=pltpu.CompilerParams(
            dimension_semantics=("parallel",)),
    )(x_p, w_f_p, b_f_p)

    return out[:batch, :embed_dim]


def multihead_attention(x, w_qkv, b_qkv, w_o, b_o, num_heads, *,
                        compute_dtype=jnp.float32, out_dtype=None,
                        force_pallas=None):
    """Convenience wrapper (prefer caching prepare_fused_params at init)."""
    w_f_p, b_f_p, embed_dim = prepare_fused_params(
        w_qkv, b_qkv, w_o, b_o, num_heads, compute_dtype=compute_dtype)
    return mha_forward_fused(x, w_f_p, b_f_p, embed_dim,
                             out_dtype=out_dtype, force_pallas=force_pallas)


# --------------------------------------------------------------------------
# Reference & test harness
# --------------------------------------------------------------------------
def xavier_uniform(key, shape):
    fan_out, fan_in = shape
    bound = math.sqrt(6.0 / (fan_in + fan_out))
    return jax.random.uniform(key, shape, jnp.float32, -bound, bound)


def reference(x, w_qkv, b_qkv, w_o, b_o, num_heads):
    """Plain-JAX transcription of the full PyTorch forward (incl. softmax)."""
    batch, _ = x.shape
    embed_dim = w_o.shape[0]
    head_dim = embed_dim // num_heads
    xs = x[:, None, :]                                       # (B,1,D)
    qkv = xs @ w_qkv.T + b_qkv                               # (B,1,3E)
    qkv = qkv.reshape(batch, 1, num_heads, 3 * head_dim).transpose(0, 2, 1, 3)
    q, k, v = jnp.split(qkv, 3, axis=-1)
    logits = (q @ jnp.swapaxes(k, -2, -1)) / math.sqrt(head_dim)
    attn = jax.nn.softmax(logits, axis=-1)
    vals = attn @ v
    vals = vals.transpose(0, 2, 1, 3).reshape(batch, 1, embed_dim)
    return (vals @ w_o.T + b_o)[:, 0, :]


if __name__ == "__main__":
    input_dim, embed_dim, num_heads = 16, 32, 4

    key = jax.random.PRNGKey(0)
    kx, kq, ko, kx2 = jax.random.split(key, 4)

    w_qkv = xavier_uniform(kq, (3 * embed_dim, input_dim))
    b_qkv = jnp.zeros((3 * embed_dim,), jnp.float32)
    w_o = xavier_uniform(ko, (embed_dim, embed_dim))
    b_o = jnp.zeros((embed_dim,), jnp.float32)

    # ---- test 1: tiny batch, f32 compute, force the Pallas path ----------
    x = jax.random.normal(kx, (2, input_dim), jnp.float32)
    w_f, b_f, _ = prepare_fused_params(w_qkv, b_qkv, w_o, b_o, num_heads,
                                       compute_dtype=jnp.float32)
    out = mha_forward_fused(x, w_f, b_f, embed_dim, force_pallas=True)
    out = jax.block_until_ready(out)
    ref = reference(x, w_qkv, b_qkv, w_o, b_o, num_heads)
    assert out.shape == (2, embed_dim)
    assert jnp.allclose(out, ref, atol=1e-4, rtol=1e-4), "f32 mismatch vs reference"

    # ---- test 2: multi-tile batch, bf16 MXU operands, f32 accumulate -----
    x2 = jax.random.normal(kx2, (320, input_dim), jnp.float32)
    w_fb, b_fb, _ = prepare_fused_params(w_qkv, b_qkv, w_o, b_o, num_heads,
                                         compute_dtype=jnp.bfloat16)
    out2 = mha_forward_fused(x2, w_fb, b_fb, embed_dim, out_dtype=jnp.float32)
    out2 = jax.block_until_ready(out2)
    ref2 = reference(x2, w_qkv, b_qkv, w_o, b_o, num_heads)
    assert out2.shape == (320, embed_dim)
    max_err = float(jnp.max(jnp.abs(out2 - ref2)))
    assert max_err < 5e-2, f"bf16 mismatch vs reference: max abs err {max_err}"

    print("KERNEL_OK")
</pallas_src>

<mosaic_0001>
module attributes {stable_mosaic.version = 11 : i64} {
  func.func @mha_seq1_fused_kernel(%arg0: i32, %arg1: memref<8x16xf32, #tpu.memory_space<vmem>>, %arg2: memref<16x128xf32, #tpu.memory_space<vmem>>, %arg3: memref<1x128xf32, #tpu.memory_space<vmem>>, %arg4: memref<8x128xf32, #tpu.memory_space<vmem>>) attributes {dimension_semantics = [#tpu.dimension_semantics<parallel>], iteration_bounds = array<i64: 1>, scalar_prefetch = 0 : i64, scratch_operands = 0 : i64, tpu.core_type = #tpu.core_type<tc>, window_params = [{transform_indices = @transform_0, window_bounds = array<i64: 8, 16>}, {pipeline_mode = #tpu.pipeline_mode<synchronous>, transform_indices = @transform_1, window_bounds = array<i64: 16, 128>}, {pipeline_mode = #tpu.pipeline_mode<synchronous>, transform_indices = @transform_2, window_bounds = array<i64: 1, 128>}, {transform_indices = @transform_3, window_bounds = array<i64: 8, 128>}]} {
    %c0 = arith.constant 0 : index
    %c0_0 = arith.constant 0 : index
    %0 = vector.load %arg1[%c0, %c0_0] : memref<8x16xf32, #tpu.memory_space<vmem>>, vector<8x16xf32>
    %c0_1 = arith.constant 0 : index
    %c0_2 = arith.constant 0 : index
    %1 = vector.load %arg2[%c0_1, %c0_2] : memref<16x128xf32, #tpu.memory_space<vmem>>, vector<16x128xf32>
    %cst = arith.constant dense<0.000000e+00> : vector<8x128xf32>
    %2 = tpu.matmul %0, %1, %cst {dimension_numbers = #tpu.dot_dimension_numbers<[1], [0], [0], [1], [0, 0, 1, 1], [], []>} : vector<8x16xf32>, vector<16x128xf32>, vector<8x128xf32> -> vector<8x128xf32>
    %c0_3 = arith.constant 0 : index
    %c0_4 = arith.constant 0 : index
    %3 = vector.load %arg3[%c0_3, %c0_4] : memref<1x128xf32, #tpu.memory_space<vmem>>, vector<1x128xf32>
    %4 = vector.broadcast %3 : vector<1x128xf32> to vector<8x128xf32>
    %5 = arith.addf %2, %4 : vector<8x128xf32>
    %c0_5 = arith.constant 0 : index
    %c0_6 = arith.constant 0 : index
    %6 = vector.load %arg4[%c0_5, %c0_6] : memref<8x128xf32, #tpu.memory_space<vmem>>, vector<8x128xf32>
    tpu.vector_store %arg4[%c0_5, %c0_6], %5 {strides = array<i32>} : memref<8x128xf32, #tpu.memory_space<vmem>>, vector<8x128xf32>,
    return
  }
  func.func @transform_0(%arg0: i32) -> (i32, i32) {
    %c0_i32 = arith.constant 0 : i32
    %c0_i32_0 = arith.constant 0 : i32
    return %arg0, %c0_i32 : i32, i32
  }
  func.func @transform_1(%arg0: i32) -> (i32, i32) {
    %c0_i32 = arith.constant 0 : i32
    %c0_i32_0 = arith.constant 0 : i32
    %c0_i32_1 = arith.constant 0 : i32
    return %c0_i32, %c0_i32_0 : i32, i32
  }
  func.func @transform_2(%arg0: i32) -> (i32, i32) {
    %c0_i32 = arith.constant 0 : i32
    %c0_i32_0 = arith.constant 0 : i32
    %c0_i32_1 = arith.constant 0 : i32
    return %c0_i32, %c0_i32_0 : i32, i32
  }
  func.func @transform_3(%arg0: i32) -> (i32, i32) {
    %c0_i32 = arith.constant 0 : i32
    %c0_i32_0 = arith.constant 0 : i32
    return %arg0, %c0_i32 : i32, i32
  }
}

</mosaic_0001>

<llo_original>
// kernel: tpu_custom_call.1
$region0: #{tpu_custom_call.1}
  #allocation0 [shape = 'u32[]', space=smem, size = 0x4, offset = 0x4, fixed_abs, tag = 'smem constant byte address 0x4 - core index']
  #allocation1 [shape = 'u32[144,128]{1,0:T(1,128)}', space=vmem, size = 0x12000, scoped, tag = 'internal scratch']
  %s0 = inlined_call_operand.hbm [shape: f32[8,16], index: 0, kind: input, shape index: {}]
  %s1 = inlined_call_operand.hbm [shape: f32[16,128], index: 1, kind: input, shape index: {}]
  %s2 = inlined_call_operand.vmem [shape: f32[1,128], index: 2, kind: input, shape index: {}]
  %s3 = inlined_call_operand.hbm [shape: f32[8,128], index: 3, kind: output, shape index: {}]
  %s4 = sld [smem:[#allocation0]]
  $region30: #{tpu_custom_call.1} parent=0
    _
  %s6 = ssub.s32 1, %s4
  %s7 = scalar_select 0, %s6, %s4
  $region1: #{tpu_custom_call.1} parent=0
    #allocation2 [shape = 'u8[4096]{0}', space=vmem, size = 0x1000, scoped, tag = 'input window, operand 0, single buffered']
    #allocation3 [shape = 's32[1]{0}', space=sflag, size = 0x4, scoped, tag = 'scoped memory for tpu_custom_call.1']
    #allocation4 [shape = 's32[1]{0}', space=sflag, size = 0x4, scoped, tag = 'scoped memory for tpu_custom_call.1']
    #allocation5 [shape = 'u8[8192]{0}', space=vmem, size = 0x2000, scoped, tag = 'input window, operand 1, single buffered']
    #allocation6 [shape = 's32[1]{0}', space=sflag, size = 0x4, scoped, tag = 'scoped memory for tpu_custom_call.1']
    #allocation7 [shape = 'u8[4096]{0}', space=vmem, size = 0x1000, scoped, tag = 'output window, operand 0, single buffered']
    %8 = vsyncpa [#allocation3], 0
    %9 = vsyncpa [#allocation6], 0
    %10 = vsyncpa [#allocation4], 0
    // Predicated region
    $region2: #{tpu_custom_call.1} parent=1 // pred_check
      _
    $region3: #{tpu_custom_call.1} parent=1 // pred_check_branch
      %12 = sbr.rel (0) target = $region5
    $region4: #{tpu_custom_call.1} parent=1 // pred_region
      %s14 = ssub.s32 128, 128
      %15 = vsyncadd [#allocation3], %s14
      %s17 = sshll.u32 [#allocation2], 4
      %s18 = int_to_ptr.vmem [resolvable:$true] %s17
      %20 = dma.hbm_to_vmem [thread:$0]  %s0, 128, %s18, [#allocation3]
    $region5: #{tpu_custom_call.1} parent=1 // pred_fallthru
      _
    // Predicated region
    $region6: #{tpu_custom_call.1} parent=1 // pred_check
      _
    $region7: #{tpu_custom_call.1} parent=1 // pred_check_branch
      %22 = sbr.rel (0) target = $region9
    $region8: #{tpu_custom_call.1} parent=1 // pred_region
      %s24 = ssub.s32 256, 256
      %25 = vsyncadd [#allocation6], %s24
      %s26 = sshll.u32 [#allocation5], 4
      %s27 = int_to_ptr.vmem [resolvable:$true] %s26
      %32 = dma.hbm_to_vmem [thread:$0]  %s1, 256, %s27, [#allocation6], 128, 128, 8
    $region9: #{tpu_custom_call.1} parent=1 // pred_fallthru
      _
    // Predicated region
    $region10: #{tpu_custom_call.1} parent=1 // pred_check
      _
    $region11: #{tpu_custom_call.1} parent=1 // pred_check_branch
      %34 = sbr.rel (0) target = $region13
    $region12: #{tpu_custom_call.1} parent=1 // pred_region
      _
    $region13: #{tpu_custom_call.1} parent=1 // pred_fallthru
      _
    // Predicated region
    $region14: #{tpu_custom_call.1} parent=1 // pred_check
      _
    $region15: #{tpu_custom_call.1} parent=1 // pred_check_branch
      %36 = sbr.rel (0) target = $region17
    $region16: #{tpu_custom_call.1} parent=1 // pred_region
      %37 = dma.done [#allocation3], 128
    $region17: #{tpu_custom_call.1} parent=1 // pred_fallthru
      _
    // Predicated region
    $region18: #{tpu_custom_call.1} parent=1 // pred_check
      _
    $region19: #{tpu_custom_call.1} parent=1 // pred_check_branch
      %39 = sbr.rel (0) target = $region21
    $region20: #{tpu_custom_call.1} parent=1 // pred_region
      %40 = dma.done [#allocation6], 256
    $region21: #{tpu_custom_call.1} parent=1 // pred_fallthru
      _
    %v41 = vld [vmem:[#allocation2] sm:$0xff]
    %v42 = vld [vmem:[#allocation5] sm:$0xff]
    %v43 = vld [vmem:[#allocation5 + $0x8] sm:$0xff]
    %v44 = vld [vmem:[%s2] sm:$0x1]
    %v46 = vlaneseq
    %v47 = vshrl.u32 %v46, 7
    %v48 = vsub.s32 0, %v47
    %v49 = vrot.slane %v44, %v48
    %vm51 = vcmask 130048
    %v53 = vsel %vm51, %v41, 0
    %55 = vmatprep.subr.mxu0 0.0
    %56 = vmatpush1.msra.mxu0 0.0
    %57 = vmatprep.subr.mxu0 0.0
    %58 = vmatpush1.msra.mxu0 0.0
    %59 = vmatprep.subr.mxu0 0.0
    %60 = vmatpush1.msra.mxu0 0.0
    %61 = vmatprep.subr.mxu0 0.0
    %62 = vmatpush1.msra.mxu0 0.0
    %63 = vmatprep.subr.mxu0 0.0
    %64 = vmatpush1.msra.mxu0 0.0
    %65 = vmatprep.subr.mxu0 0.0
    %66 = vmatpush1.msra.mxu0 0.0
    %67 = vmatprep.subr.mxu0 0.0
    %68 = vmatpush1.msra.mxu0 0.0
    %69 = vmatprep.subr.mxu0 0.0
    %70 = vmatpush1.msra.mxu0 0.0
    %71 = vmatprep.subr.mxu0 0.0
    %72 = vmatpush1.msra.mxu0 0.0
    %73 = vmatprep.subr.mxu0 0.0
    %74 = vmatpush1.msra.mxu0 0.0
    %75 = vmatprep.subr.mxu0 0.0
    %76 = vmatpush1.msra.mxu0 0.0
    %77 = vmatprep.subr.mxu0 0.0
    %78 = vmatpush1.msra.mxu0 0.0
    %79 = vmatprep.subr.mxu0 0.0
    %80 = vmatpush1.msra.mxu0 0.0
    %81 = vmatprep.subr.mxu0 0.0
    %82 = vmatpush1.msra.mxu0 0.0
    %83 = vmatprep.subr.mxu0 0.0
    %84 = vmatpush1.msra.mxu0 %v43
    %85 = vmatprep.subr.mxu0 0.0
    %86 = vmatpush1.msra.mxu0 %v42
    %87 = vmatprep.subr.mxu0 0.0
    %88 = vmatpush2.msra.mxu0 0.0
    %89 = vmatprep.subr.mxu0 0.0
    %90 = vmatpush2.msra.mxu0 0.0
    %91 = vmatprep.subr.mxu0 0.0
    %92 = vmatpush2.msra.mxu0 0.0
    %93 = vmatprep.subr.mxu0 0.0
    %94 = vmatpush2.msra.mxu0 0.0
    %95 = vmatprep.subr.mxu0 0.0
    %96 = vmatpush2.msra.mxu0 0.0
    %97 = vmatprep.subr.mxu0 0.0
    %98 = vmatpush2.msra.mxu0 0.0
    %99 = vmatprep.subr.mxu0 0.0
    %100 = vmatpush2.msra.mxu0 0.0
    %101 = vmatprep.subr.mxu0 0.0
    %102 = vmatpush2.msra.mxu0 0.0
    %103 = vmatprep.subr.mxu0 0.0
    %104 = vmatpush2.msra.mxu0 0.0
    %105 = vmatprep.subr.mxu0 0.0
    %106 = vmatpush2.msra.mxu0 0.0
    %107 = vmatprep.subr.mxu0 0.0
    %108 = vmatpush2.msra.mxu0 0.0
    %109 = vmatprep.subr.mxu0 0.0
    %110 = vmatpush2.msra.mxu0 0.0
    %111 = vmatprep.subr.mxu0 0.0
    %112 = vmatpush2.msra.mxu0 0.0
    %113 = vmatprep.subr.mxu0 0.0
    %114 = vmatpush2.msra.mxu0 0.0
    %115 = vmatprep.subr.mxu0 0.0
    %116 = vmatpush2.msra.mxu0 0.0
    %117 = vmatprep.subr.mxu0 0.0
    %118 = vmatpush2.msra.mxu0 0.0
    %119 = vmatprep.mubr.f32.mxu0 0.0
    %120 = vmatmul.mubr.f32.gmra.mxu0 %v53
    %v121 = vpop.f32.mrf.mxu0
    %v122 = vadd.f32 %v49, %v121
    %v123 = vpop.f32.mrf.mxu0
    %124 = vdwg.mxu0
    %125 = vst [vmem:[#allocation7] sm:$0xff] %v122
    // Predicated region
    $region22: #{tpu_custom_call.1} parent=1 // pred_check
      _
    $region23: #{tpu_custom_call.1} parent=1 // pred_check_branch
      %127 = sbr.rel (0) target = $region25
    $region24: #{tpu_custom_call.1} parent=1 // pred_region
      %s129 = ssub.s32 128, 128
      %130 = vsyncadd [#allocation4], %s129
      %s132 = sshll.u32 [#allocation7], 4
      %s133 = int_to_ptr.vmem [resolvable:$true] %s132
      %135 = dma.vmem_to_hbm [thread:$0]  %s133, 128, %s3, [#allocation4]
    $region25: #{tpu_custom_call.1} parent=1 // pred_fallthru
      _
    // Predicated region
    $region26: #{tpu_custom_call.1} parent=1 // pred_check
      _
    $region27: #{tpu_custom_call.1} parent=1 // pred_check_branch
      %137 = sbr.rel (0) target = $region29
    $region28: #{tpu_custom_call.1} parent=1 // pred_region
      %138 = dma.done [#allocation4], 128
    $region29: #{tpu_custom_call.1} parent=1 // pred_fallthru
      _
    %139 = vsyncpa [#allocation3], 1
    %140 = vsyncpa [#allocation6], 1
    %141 = vsyncpa [#allocation4], 1

</llo_original>
